<compile_context>
chip_gen: v7x
topology: tpu7x:2x2x1
jax: 0.10.0
libtpu: 0.0.40
codegen_flags: <defaults>
</compile_context>

<pallas_src>
import functools

import jax
import jax.numpy as jnp
from jax.experimental import pallas as pl
from jax.experimental.pallas import tpu as pltpu


def gate_kernel(x1_ref, x2_ref, tgt_ref, w1_ref, w2_ref, u_ref, b_ref, out_ref,
                *, d_hidden, mm_dtype):
    H = d_hidden

    # Activations arrive in f32; cast to the MXU dtype in-register.  x1 is kept
    # in f32 for the output mix so it matches the full-precision reference.
    x1_f32 = x1_ref[...].astype(jnp.float32)
    x1 = x1_f32.astype(mm_dtype)
    x2 = x2_ref[...].astype(mm_dtype)
    tgt = tgt_ref[...].astype(mm_dtype)

    # Three dense matmuls (no zero-block FLOPs), f32 accumulation on the MXU.
    #   proj_t = tgt @ [u1 | u2]   -> (TB, 2H)
    #   p1_1   = x1  @ w1          -> (TB, H)
    #   p2_1   = x2  @ w2 + b2     -> (TB, H)   (needed standalone for the mix)
    proj_t = jnp.dot(tgt, u_ref[...], preferred_element_type=jnp.float32)
    p1_1 = jnp.dot(x1, w1_ref[...], preferred_element_type=jnp.float32)
    p2_1 = (jnp.dot(x2, w2_ref[...], preferred_element_type=jnp.float32)
            + b_ref[:, H:2 * H])

    # Elementwise math stays f32 (v5e VPU/EUP have no bf16 path).
    z_l = jnp.tanh(p1_1 + proj_t[:, 0:H] + b_ref[:, 0:H])          # b1 + bu1
    z_r = jnp.tanh(p2_1 + proj_t[:, H:2 * H] + b_ref[:, 2 * H:3 * H])  # + bu2

    # softmax over the pair {z_l, z_r} == sigmoid(z_l - z_r) (exact identity).
    # |z_l - z_r| <= 2 so the exp cannot overflow; the divide goes to the EUP
    # reciprocal slot (vrcp) next to the exp/tanh.
    w_l = pl.reciprocal(1.0 + jnp.exp(z_r - z_l), approx=True)
    w_r = 1.0 - w_l

    out_ref[...] = (w_l * x1_f32 + w_r * p2_1).astype(out_ref.dtype)


def prepare_gate_params(params, *, use_bf16=True):
    """One-time parameter prep: column-fuse the two target projections and fold
    the biases into a single (1, 3H) f32 row.  No zero blocks anywhere."""
    w_dtype = jnp.bfloat16 if use_bf16 else jnp.float32
    H = params["w1"].shape[1]
    u = jnp.concatenate([params["u1"], params["u2"]], axis=1)            # (dt, 2H)
    bias = jnp.concatenate([params["b1"] + params["bu1"],                # z_l bias
                            params["b2"],                                # p2_1 bias
                            params["bu2"]], axis=1).astype(jnp.float32)  # z_r extra
    return {
        "w1": params["w1"].astype(w_dtype),
        "w2": params["w2"].astype(w_dtype),
        "u": u.astype(w_dtype),
        "bias": bias,
        "d_hidden": H,
        "mm_dtype": w_dtype,
    }


def _pick_tb(B):
    """Batch tile: single block for small B; otherwise >=2 grid steps (both v7x
    TensorCores get work) with ~512-row tiles (v6e HBM-roofline sweet spot)."""
    if B <= 256:
        return B
    half = pl.cdiv(B, 2)
    return min(512, ((half + 7) // 8) * 8)


def gate_forward(input1_seq, input2_seq, target, prepped, *, out_dtype=jnp.float32):
    """input1_seq: (B,1,d1), input2_seq: (B,1,d2), target: (B,1,dt) -> (B,1,H)."""
    B = input1_seq.shape[0]
    H = prepped["d_hidden"]
    mm_dtype = prepped["mm_dtype"]

    d1 = input1_seq.shape[-1]
    d2 = input2_seq.shape[-1]
    dt = target.shape[-1]
    # The PyTorch forward broadcasts z_l_w * input1_seq -> requires d_part1 == d_hidden.
    assert d1 == H, f"d_part1 ({d1}) must equal d_hidden ({H}) for the output mix"

    # (B, 1, d) -> (B, d): feature dim on lanes.  No activation concat and no
    # wrapper-side dtype cast -> no extra HBM passes before the kernel.
    x1 = input1_seq.reshape(B, d1)
    x2 = input2_seq.reshape(B, d2)
    tgt = target.reshape(B, dt)

    TB = _pick_tb(B)
    grid = (pl.cdiv(B, TB),)

    # VMEM budget: double-buffered activation/output tiles + resident weights
    # + materialized f32 intermediates (proj_t, p1_1, p2_1, z_l/z_r/w_l temps).
    w_isz = jnp.dtype(mm_dtype).itemsize
    o_isz = jnp.dtype(out_dtype).itemsize
    act = TB * (d1 + d2 + dt) * 4                       # f32 activations
    out_b = TB * H * o_isz
    weights = (d1 * H + d2 * H + dt * 2 * H) * w_isz + 3 * H * 4
    temps = TB * 6 * H * 4                              # f32 intermediates
    need = 2 * (act + out_b) + weights + temps
    vmem_limit = min(max(int(need * 1.5), 8 << 20), 48 << 20)  # cap: v7x has 64 MiB/TC
    # TODO(synk): if the resident weights alone exceed ~32 MiB (very large H),
    # add a trailing "arbitrary" K grid axis with an f32 accumulator scratch
    # instead of keeping the whole weight resident.

    kernel = functools.partial(gate_kernel, d_hidden=H, mm_dtype=mm_dtype)
    out = pl.pallas_call(
        kernel,
        out_shape=jax.ShapeDtypeStruct((B, H), out_dtype),
        grid=grid,
        in_specs=[
            pl.BlockSpec((TB, d1), lambda i: (i, 0)),      # x1   (batch-tiled)
            pl.BlockSpec((TB, d2), lambda i: (i, 0)),      # x2
            pl.BlockSpec((TB, dt), lambda i: (i, 0)),      # target
            pl.BlockSpec((d1, H), lambda i: (0, 0)),       # w1        (resident)
            pl.BlockSpec((d2, H), lambda i: (0, 0)),       # w2        (resident)
            pl.BlockSpec((dt, 2 * H), lambda i: (0, 0)),   # [u1|u2]   (resident)
            pl.BlockSpec((1, 3 * H), lambda i: (0, 0)),    # fused f32 bias
        ],
        out_specs=pl.BlockSpec((TB, H), lambda i: (i, 0)),
        compiler_params=pltpu.CompilerParams(
            dimension_semantics=("parallel",),   # megacore shard on v7x; no-op v5e/v6e
            vmem_limit_bytes=vmem_limit,
        ),
    )(x1, x2, tgt, prepped["w1"], prepped["w2"], prepped["u"], prepped["bias"])
    return out.reshape(B, 1, H)


def init_params(key, d_part1, d_part2, d_target, d_hidden):
    """Deterministic init matching nn.Linear shapes (stored transposed as (in, out))."""
    ks = jax.random.split(key, 8)

    def lin(kw, kb, fan_in, fan_out):
        bound = 1.0 / jnp.sqrt(fan_in)
        w = jax.random.uniform(kw, (fan_in, fan_out), jnp.float32, -bound, bound)
        b = jax.random.uniform(kb, (1, fan_out), jnp.float32, -bound, bound)
        return w, b

    w1, b1 = lin(ks[0], ks[1], d_part1, d_hidden)    # p1_tar_w
    u1, bu1 = lin(ks[2], ks[3], d_target, d_hidden)  # p1_tar_u
    w2, b2 = lin(ks[4], ks[5], d_part2, d_hidden)    # p2_tar_w
    u2, bu2 = lin(ks[6], ks[7], d_target, d_hidden)  # p2_tar_u
    # NOTE: self.layer_norm is defined in __init__ but never used in forward -> omitted.
    return dict(w1=w1, b1=b1, u1=u1, bu1=bu1, w2=w2, b2=b2, u2=u2, bu2=bu2)


def gate_reference(input1_seq, input2_seq, target, params):
    """Pure-JAX reference mirroring the PyTorch forward exactly."""
    p1_1 = input1_seq @ params["w1"] + params["b1"]
    p1_2 = target @ params["u1"] + params["bu1"]
    p2_1 = input2_seq @ params["w2"] + params["b2"]
    p2_2 = target @ params["u2"] + params["bu2"]
    z_l = jnp.tanh(p1_1 + p1_2)
    z_r = jnp.tanh(p2_1 + p2_2)
    z_w = jnp.concatenate([z_l, z_r], axis=1)        # (B, 2, H)
    z_w = jax.nn.softmax(z_w, axis=1)
    z_l_w = z_w[:, 0:1, :]
    z_r_w = z_w[:, 1:2, :]
    return z_l_w * input1_seq + z_r_w * p2_1


if __name__ == "__main__":
    # The broadcast `z_l_w * input1_seq` requires d_part1 == d_hidden.
    # H = 128 keeps the output lane-dense (unmasked stores) and puts the
    # [u1|u2] column split on a vreg boundary.
    B, d_part1, d_part2, d_target, d_hidden = 2, 128, 128, 64, 128

    key = jax.random.PRNGKey(0)
    kp, k1, k2, k3 = jax.random.split(key, 4)
    params = init_params(kp, d_part1, d_part2, d_target, d_hidden)

    input1_seq = jax.random.normal(k1, (B, 1, d_part1), jnp.float32)
    input2_seq = jax.random.normal(k2, (B, 1, d_part2), jnp.float32)
    target = jax.random.normal(k3, (B, 1, d_target), jnp.float32)

    ref = gate_reference(input1_seq, input2_seq, target, params)

    # f32-weight path: tight check (slack covers the approx EUP reciprocal).
    prepped_f32 = prepare_gate_params(params, use_bf16=False)
    out_f32 = gate_forward(input1_seq, input2_seq, target, prepped_f32)
    out_f32 = jax.block_until_ready(out_f32)
    assert out_f32.shape == (B, 1, d_hidden), out_f32.shape
    assert jnp.allclose(out_f32, ref, atol=5e-3, rtol=5e-3), \
        float(jnp.max(jnp.abs(out_f32 - ref)))

    # bf16 MXU-operand path (native on v6e/v7x): looser tolerance for the cast;
    # x1 is still mixed in f32 inside the kernel.
    prepped_bf16 = prepare_gate_params(params, use_bf16=True)
    out_bf16 = gate_forward(input1_seq, input2_seq, target, prepped_bf16)
    out_bf16 = jax.block_until_ready(out_bf16)
    assert out_bf16.shape == (B, 1, d_hidden), out_bf16.shape
    assert jnp.allclose(out_bf16, ref, atol=5e-2, rtol=5e-2), \
        float(jnp.max(jnp.abs(out_bf16 - ref)))

    print("KERNEL_OK")
</pallas_src>

<mosaic_0001>
module attributes {stable_mosaic.version = 11 : i64} {
  func.func @gate_kernel(%arg0: i32, %arg1: memref<2x128xf32, #tpu.memory_space<vmem>>, %arg2: memref<2x128xf32, #tpu.memory_space<vmem>>, %arg3: memref<2x64xf32, #tpu.memory_space<vmem>>, %arg4: memref<128x128xf32, #tpu.memory_space<vmem>>, %arg5: memref<128x128xf32, #tpu.memory_space<vmem>>, %arg6: memref<64x256xf32, #tpu.memory_space<vmem>>, %arg7: memref<1x384xf32, #tpu.memory_space<vmem>>, %arg8: memref<2x128xf32, #tpu.memory_space<vmem>>) attributes {dimension_semantics = [#tpu.dimension_semantics<parallel>], iteration_bounds = array<i64: 1>, scalar_prefetch = 0 : i64, scratch_operands = 0 : i64, tpu.core_type = #tpu.core_type<tc>, window_params = [{transform_indices = @transform_0, window_bounds = array<i64: 2, 128>}, {transform_indices = @transform_1, window_bounds = array<i64: 2, 128>}, {transform_indices = @transform_2, window_bounds = array<i64: 2, 64>}, {pipeline_mode = #tpu.pipeline_mode<synchronous>, transform_indices = @transform_3, window_bounds = array<i64: 128, 128>}, {pipeline_mode = #tpu.pipeline_mode<synchronous>, transform_indices = @transform_4, window_bounds = array<i64: 128, 128>}, {pipeline_mode = #tpu.pipeline_mode<synchronous>, transform_indices = @transform_5, window_bounds = array<i64: 64, 256>}, {pipeline_mode = #tpu.pipeline_mode<synchronous>, transform_indices = @transform_6, window_bounds = array<i64: 1, 384>}, {transform_indices = @transform_7, window_bounds = array<i64: 2, 128>}]} {
    %c0 = arith.constant 0 : index
    %c0_0 = arith.constant 0 : index
    %0 = vector.load %arg1[%c0, %c0_0] : memref<2x128xf32, #tpu.memory_space<vmem>>, vector<2x128xf32>
    %c0_1 = arith.constant 0 : index
    %c0_2 = arith.constant 0 : index
    %1 = vector.load %arg2[%c0_1, %c0_2] : memref<2x128xf32, #tpu.memory_space<vmem>>, vector<2x128xf32>
    %c0_3 = arith.constant 0 : index
    %c0_4 = arith.constant 0 : index
    %2 = vector.load %arg3[%c0_3, %c0_4] : memref<2x64xf32, #tpu.memory_space<vmem>>, vector<2x64xf32>
    %c0_5 = arith.constant 0 : index
    %c0_6 = arith.constant 0 : index
    %3 = vector.load %arg6[%c0_5, %c0_6] : memref<64x256xf32, #tpu.memory_space<vmem>>, vector<64x256xf32>
    %cst = arith.constant dense<0.000000e+00> : vector<2x256xf32>
    %4 = tpu.matmul %2, %3, %cst {dimension_numbers = #tpu.dot_dimension_numbers<[1], [0], [0], [1], [0, 0, 1, 1], [], []>} : vector<2x64xf32>, vector<64x256xf32>, vector<2x256xf32> -> vector<2x256xf32>
    %c0_7 = arith.constant 0 : index
    %c0_8 = arith.constant 0 : index
    %5 = vector.load %arg4[%c0_7, %c0_8] : memref<128x128xf32, #tpu.memory_space<vmem>>, vector<128x128xf32>
    %cst_9 = arith.constant dense<0.000000e+00> : vector<2x128xf32>
    %6 = tpu.matmul %0, %5, %cst_9 {dimension_numbers = #tpu.dot_dimension_numbers<[1], [0], [0], [1], [0, 0, 1, 1], [], []>} : vector<2x128xf32>, vector<128x128xf32>, vector<2x128xf32> -> vector<2x128xf32>
    %c0_10 = arith.constant 0 : index
    %c0_11 = arith.constant 0 : index
    %7 = vector.load %arg5[%c0_10, %c0_11] : memref<128x128xf32, #tpu.memory_space<vmem>>, vector<128x128xf32>
    %cst_12 = arith.constant dense<0.000000e+00> : vector<2x128xf32>
    %8 = tpu.matmul %1, %7, %cst_12 {dimension_numbers = #tpu.dot_dimension_numbers<[1], [0], [0], [1], [0, 0, 1, 1], [], []>} : vector<2x128xf32>, vector<128x128xf32>, vector<2x128xf32> -> vector<2x128xf32>
    %c0_13 = arith.constant 0 : index
    %c128 = arith.constant 128 : index
    %9 = vector.load %arg7[%c0_13, %c128] : memref<1x384xf32, #tpu.memory_space<vmem>>, vector<1x128xf32>
    %10 = vector.broadcast %9 : vector<1x128xf32> to vector<2x128xf32>
    %11 = arith.addf %8, %10 : vector<2x128xf32>
    %12 = vector.extract_strided_slice %4 {offsets = [0, 0], sizes = [2, 128], strides = [1, 1]} : vector<2x256xf32> to vector<2x128xf32>
    %13 = arith.addf %6, %12 : vector<2x128xf32>
    %c0_14 = arith.constant 0 : index
    %c0_15 = arith.constant 0 : index
    %14 = vector.load %arg7[%c0_14, %c0_15] : memref<1x384xf32, #tpu.memory_space<vmem>>, vector<1x128xf32>
    %15 = vector.broadcast %14 : vector<1x128xf32> to vector<2x128xf32>
    %16 = arith.addf %13, %15 : vector<2x128xf32>
    %17 = math.tanh %16 : vector<2x128xf32>
    %18 = vector.extract_strided_slice %4 {offsets = [0, 128], sizes = [2, 128], strides = [1, 1]} : vector<2x256xf32> to vector<2x128xf32>
    %19 = arith.addf %11, %18 : vector<2x128xf32>
    %c0_16 = arith.constant 0 : index
    %c256 = arith.constant 256 : index
    %20 = vector.load %arg7[%c0_16, %c256] : memref<1x384xf32, #tpu.memory_space<vmem>>, vector<1x128xf32>
    %21 = vector.broadcast %20 : vector<1x128xf32> to vector<2x128xf32>
    %22 = arith.addf %19, %21 : vector<2x128xf32>
    %23 = math.tanh %22 : vector<2x128xf32>
    %24 = arith.subf %23, %17 : vector<2x128xf32>
    %25 = math.exp %24 : vector<2x128xf32>
    %cst_17 = arith.constant 1.000000e+00 : f32
    %26 = vector.broadcast %cst_17 : f32 to vector<2x128xf32>
    %27 = arith.addf %26, %25 : vector<2x128xf32>
    %28 = tpu.reciprocal %27 {approx = true} : vector<2x128xf32> -> vector<2x128xf32>
    %cst_18 = arith.constant 1.000000e+00 : f32
    %29 = vector.broadcast %cst_18 : f32 to vector<2x128xf32>
    %30 = arith.subf %29, %28 : vector<2x128xf32>
    %31 = arith.mulf %28, %0 : vector<2x128xf32>
    %32 = arith.mulf %30, %11 : vector<2x128xf32>
    %33 = arith.addf %31, %32 : vector<2x128xf32>
    %c0_19 = arith.constant 0 : index
    %c0_20 = arith.constant 0 : index
    %34 = vector.load %arg8[%c0_19, %c0_20] : memref<2x128xf32, #tpu.memory_space<vmem>>, vector<2x128xf32>
    tpu.vector_store %arg8[%c0_19, %c0_20], %33 {strides = array<i32>} : memref<2x128xf32, #tpu.memory_space<vmem>>, vector<2x128xf32>,
    return
  }
  func.func @transform_0(%arg0: i32) -> (i32, i32) {
    %c0_i32 = arith.constant 0 : i32
    %c0_i32_0 = arith.constant 0 : i32
    return %arg0, %c0_i32 : i32, i32
  }
  func.func @transform_1(%arg0: i32) -> (i32, i32) {
    %c0_i32 = arith.constant 0 : i32
    %c0_i32_0 = arith.constant 0 : i32
    return %arg0, %c0_i32 : i32, i32
  }
  func.func @transform_2(%arg0: i32) -> (i32, i32) {
    %c0_i32 = arith.constant 0 : i32
    %c0_i32_0 = arith.constant 0 : i32
    return %arg0, %c0_i32 : i32, i32
  }
  func.func @transform_3(%arg0: i32) -> (i32, i32) {
    %c0_i32 = arith.constant 0 : i32
    %c0_i32_0 = arith.constant 0 : i32
    %c0_i32_1 = arith.constant 0 : i32
    return %c0_i32, %c0_i32_0 : i32, i32
  }
  func.func @transform_4(%arg0: i32) -> (i32, i32) {
    %c0_i32 = arith.constant 0 : i32
    %c0_i32_0 = arith.constant 0 : i32
    %c0_i32_1 = arith.constant 0 : i32
    return %c0_i32, %c0_i32_0 : i32, i32
  }
  func.func @transform_5(%arg0: i32) -> (i32, i32) {
    %c0_i32 = arith.constant 0 : i32
    %c0_i32_0 = arith.constant 0 : i32
    %c0_i32_1 = arith.constant 0 : i32
    return %c0_i32, %c0_i32_0 : i32, i32
  }
  func.func @transform_6(%arg0: i32) -> (i32, i32) {
    %c0_i32 = arith.constant 0 : i32
    %c0_i32_0 = arith.constant 0 : i32
    %c0_i32_1 = arith.constant 0 : i32
    return %c0_i32, %c0_i32_0 : i32, i32
  }
  func.func @transform_7(%arg0: i32) -> (i32, i32) {
    %c0_i32 = arith.constant 0 : i32
    %c0_i32_0 = arith.constant 0 : i32
    return %arg0, %c0_i32 : i32, i32
  }
}

</mosaic_0001>

<llo_original>
// kernel: tpu_custom_call.1
$region0: #{tpu_custom_call.1}
  #allocation0 [shape = 'u32[]', space=smem, size = 0x4, offset = 0x4, fixed_abs, tag = 'smem constant byte address 0x4 - core index']
  #allocation1 [shape = 'u32[144,128]{1,0:T(1,128)}', space=vmem, size = 0x12000, scoped, tag = 'internal scratch']
  %s0 = inlined_call_operand.hbm [shape: f32[2,128], index: 0, kind: input, shape index: {}]
  %s1 = inlined_call_operand.vmem [shape: f32[2,128], index: 1, kind: input, shape index: {}]
  %s2 = inlined_call_operand.vmem [shape: f32[2,64], index: 2, kind: input, shape index: {}]
  %s3 = inlined_call_operand.hbm [shape: f32[128,128], index: 3, kind: input, shape index: {}]
  %s4 = inlined_call_operand.hbm [shape: f32[128,128], index: 4, kind: input, shape index: {}]
  %s5 = inlined_call_operand.hbm [shape: f32[64,256], index: 5, kind: input, shape index: {}]
  %s6 = inlined_call_operand.vmem [shape: f32[1,384], index: 6, kind: input, shape index: {}]
  %s7 = inlined_call_operand.hbm [shape: f32[2,128], index: 7, kind: output, shape index: {}]
  %s8 = sld [smem:[#allocation0]]
  $region54: #{tpu_custom_call.1} parent=0
    _
  %s10 = ssub.s32 1, %s8
  %s11 = scalar_select 0, %s10, %s8
  $region1: #{tpu_custom_call.1} parent=0
    #allocation2 [shape = 'u8[1024]{0}', space=vmem, size = 0x400, scoped, tag = 'input window, operand 0, single buffered']
    #allocation3 [shape = 's32[1]{0}', space=sflag, size = 0x4, scoped, tag = 'scoped memory for tpu_custom_call.1']
    #allocation4 [shape = 's32[1]{0}', space=sflag, size = 0x4, scoped, tag = 'scoped memory for tpu_custom_call.1']
    #allocation5 [shape = 'u8[65536]{0}', space=vmem, size = 0x10000, scoped, tag = 'input window, operand 3, single buffered']
    #allocation6 [shape = 's32[1]{0}', space=sflag, size = 0x4, scoped, tag = 'scoped memory for tpu_custom_call.1']
    #allocation7 [shape = 'u8[65536]{0}', space=vmem, size = 0x10000, scoped, tag = 'input window, operand 4, single buffered']
    #allocation8 [shape = 'u8[65536]{0}', space=vmem, size = 0x10000, scoped, tag = 'input window, operand 5, single buffered']
    #allocation9 [shape = 's32[1]{0}', space=sflag, size = 0x4, scoped, tag = 'scoped memory for tpu_custom_call.1']
    #allocation10 [shape = 'u8[1024]{0}', space=vmem, size = 0x400, scoped, tag = 'output window, operand 0, single buffered']
    %12 = vsyncpa [#allocation3], 0
    %13 = vsyncpa [#allocation6], 0
    %14 = vsyncpa [#allocation9], 0
    %15 = vsyncpa [#allocation4], 0
    // Predicated region
    $region2: #{tpu_custom_call.1} parent=1 // pred_check
      _
    $region3: #{tpu_custom_call.1} parent=1 // pred_check_branch
      %17 = sbr.rel (0) target = $region5
    $region4: #{tpu_custom_call.1} parent=1 // pred_region
      %s19 = ssub.s32 32, 32
      %20 = vsyncadd [#allocation3], %s19
      %s22 = sshll.u32 [#allocation2], 4
      %s23 = int_to_ptr.vmem [resolvable:$true] %s22
      %25 = dma.hbm_to_vmem [thread:$0]  %s0, 32, %s23, [#allocation3]
    $region5: #{tpu_custom_call.1} parent=1 // pred_fallthru
      _
    // Predicated region
    $region6: #{tpu_custom_call.1} parent=1 // pred_check
      _
    $region7: #{tpu_custom_call.1} parent=1 // pred_check_branch
      %27 = sbr.rel (0) target = $region9
    $region8: #{tpu_custom_call.1} parent=1 // pred_region
      _
    $region9: #{tpu_custom_call.1} parent=1 // pred_fallthru
      _
    // Predicated region
    $region10: #{tpu_custom_call.1} parent=1 // pred_check
      _
    $region11: #{tpu_custom_call.1} parent=1 // pred_check_branch
      %29 = sbr.rel (0) target = $region13
    $region12: #{tpu_custom_call.1} parent=1 // pred_region
      _
    $region13: #{tpu_custom_call.1} parent=1 // pred_fallthru
      _
    // Predicated region
    $region14: #{tpu_custom_call.1} parent=1 // pred_check
      _
    $region15: #{tpu_custom_call.1} parent=1 // pred_check_branch
      %31 = sbr.rel (0) target = $region17
    $region16: #{tpu_custom_call.1} parent=1 // pred_region
      %s33 = ssub.s32 2048, 2048
      %34 = vsyncadd [#allocation6], %s33
      %s35 = sshll.u32 [#allocation5], 4
      %s36 = int_to_ptr.vmem [resolvable:$true] %s35
      %41 = dma.hbm_to_vmem [thread:$0]  %s3, 2048, %s36, [#allocation6], 128, 128, 8
    $region17: #{tpu_custom_call.1} parent=1 // pred_fallthru
      _
    // Predicated region
    $region18: #{tpu_custom_call.1} parent=1 // pred_check
      _
    $region19: #{tpu_custom_call.1} parent=1 // pred_check_branch
      %43 = sbr.rel (0) target = $region21
    $region20: #{tpu_custom_call.1} parent=1 // pred_region
      %s45 = ssub.s32 2048, 2048
      %46 = vsyncadd [#allocation6], %s45
      %s47 = sshll.u32 [#allocation7], 4
      %s48 = int_to_ptr.vmem [resolvable:$true] %s47
      %53 = dma.hbm_to_vmem [thread:$0]  %s4, 2048, %s48, [#allocation6], 128, 128, 8
    $region21: #{tpu_custom_call.1} parent=1 // pred_fallthru
      _
    // Predicated region
    $region22: #{tpu_custom_call.1} parent=1 // pred_check
      _
    $region23: #{tpu_custom_call.1} parent=1 // pred_check_branch
      %55 = sbr.rel (0) target = $region25
    $region24: #{tpu_custom_call.1} parent=1 // pred_region
      %s57 = ssub.s32 2048, 2048
      %58 = vsyncadd [#allocation9], %s57
      %s59 = sshll.u32 [#allocation8], 4
      %s60 = int_to_ptr.vmem [resolvable:$true] %s59
      %65 = dma.hbm_to_vmem [thread:$0]  %s5, 2048, %s60, [#allocation9], 256, 256, 16
    $region25: #{tpu_custom_call.1} parent=1 // pred_fallthru
      _
    // Predicated region
    $region26: #{tpu_custom_call.1} parent=1 // pred_check
      _
    $region27: #{tpu_custom_call.1} parent=1 // pred_check_branch
      %67 = sbr.rel (0) target = $region29
    $region28: #{tpu_custom_call.1} parent=1 // pred_region
      _
    $region29: #{tpu_custom_call.1} parent=1 // pred_fallthru
      _
    // Predicated region
    $region30: #{tpu_custom_call.1} parent=1 // pred_check
      _
    $region31: #{tpu_custom_call.1} parent=1 // pred_check_branch
      %69 = sbr.rel (0) target = $region33
    $region32: #{tpu_custom_call.1} parent=1 // pred_region
      %70 = dma.done [#allocation3], 32
    $region33: #{tpu_custom_call.1} parent=1 // pred_fallthru
      _
    // Predicated region
    $region34: #{tpu_custom_call.1} parent=1 // pred_check
      _
    $region35: #{tpu_custom_call.1} parent=1 // pred_check_branch
      %72 = sbr.rel (0) target = $region37
    $region36: #{tpu_custom_call.1} parent=1 // pred_region
      %73 = dma.done [#allocation6], 2048
    $region37: #{tpu_custom_call.1} parent=1 // pred_fallthru
      _
    // Predicated region
    $region38: #{tpu_custom_call.1} parent=1 // pred_check
      _
    $region39: #{tpu_custom_call.1} parent=1 // pred_check_branch
      %75 = sbr.rel (0) target = $region41
    $region40: #{tpu_custom_call.1} parent=1 // pred_region
      %76 = dma.done [#allocation6], 2048
    $region41: #{tpu_custom_call.1} parent=1 // pred_fallthru
      _
    // Predicated region
    $region42: #{tpu_custom_call.1} parent=1 // pred_check
      _
    $region43: #{tpu_custom_call.1} parent=1 // pred_check_branch
      %78 = sbr.rel (0) target = $region45
    $region44: #{tpu_custom_call.1} parent=1 // pred_region
      %79 = dma.done [#allocation9], 2048
    $region45: #{tpu_custom_call.1} parent=1 // pred_fallthru
      _
    %v80 = vld [vmem:[#allocation2] sm:$0x3]
    %v81 = vld [vmem:[%s1] sm:$0x3]
    %v82 = vld [vmem:[%s2] sm:$0x3]
    %v83 = vld [vmem:[#allocation8] sm:$0xff]
    %v84 = vld [vmem:[#allocation8 + $0x8] sm:$0xff]
    %v85 = vld [vmem:[#allocation8 + $0x10] sm:$0xff]
    %v86 = vld [vmem:[#allocation8 + $0x18] sm:$0xff]
    %v87 = vld [vmem:[#allocation8 + $0x20] sm:$0xff]
    %v88 = vld [vmem:[#allocation8 + $0x28] sm:$0xff]
    %v89 = vld [vmem:[#allocation8 + $0x30] sm:$0xff]
    %v90 = vld [vmem:[#allocation8 + $0x38] sm:$0xff]
    %v91 = vld [vmem:[#allocation8 + $0x40] sm:$0xff]
    %v92 = vld [vmem:[#allocation8 + $0x48] sm:$0xff]
    %v93 = vld [vmem:[#allocation8 + $0x50] sm:$0xff]
    %v94 = vld [vmem:[#allocation8 + $0x58] sm:$0xff]
    %v95 = vld [vmem:[#allocation8 + $0x60] sm:$0xff]
    %v96 = vld [vmem:[#allocation8 + $0x68] sm:$0xff]
    %v97 = vld [vmem:[#allocation8 + $0x70] sm:$0xff]
    %v98 = vld [vmem:[#allocation8 + $0x78] sm:$0xff]
    %vm99 = vcmask 523264
    %v101 = vsel %vm99, %v82, 0
    %103 = vmatprep.subr.mxu0 %v84
    %104 = vmatpush1.msra.mxu0 %v83
    %105 = vmatprep.subr.mxu0 %v86
    %106 = vmatpush1.msra.mxu0 %v85
    %107 = vmatprep.subr.mxu0 %v88
    %108 = vmatpush1.msra.mxu0 %v87
    %109 = vmatprep.subr.mxu0 %v90
    %110 = vmatpush1.msra.mxu0 %v89
    %111 = vmatprep.subr.mxu0 %v92
    %112 = vmatpush1.msra.mxu0 %v91
    %113 = vmatprep.subr.mxu0 %v94
    %114 = vmatpush1.msra.mxu0 %v93
    %115 = vmatprep.subr.mxu0 %v96
    %116 = vmatpush1.msra.mxu0 %v95
    %117 = vmatprep.subr.mxu0 %v98
    %118 = vmatpush1.msra.mxu0 %v97
    %119 = vmatprep.subr.mxu0 0.0
    %120 = vmatpush1.msra.mxu0 0.0
    %121 = vmatprep.subr.mxu0 0.0
    %122 = vmatpush1.msra.mxu0 0.0
    %123 = vmatprep.subr.mxu0 0.0
    %124 = vmatpush1.msra.mxu0 0.0
    %125 = vmatprep.subr.mxu0 0.0
    %126 = vmatpush1.msra.mxu0 0.0
    %127 = vmatprep.subr.mxu0 0.0
    %128 = vmatpush1.msra.mxu0 0.0
    %129 = vmatprep.subr.mxu0 0.0
    %130 = vmatpush1.msra.mxu0 0.0
    %131 = vmatprep.subr.mxu0 0.0
    %132 = vmatpush1.msra.mxu0 0.0
    %133 = vmatprep.subr.mxu0 0.0
    %134 = vmatpush1.msra.mxu0 0.0
    %135 = vmatprep.subr.mxu0 0.0
    %136 = vmatpush1.msra.mxu0 0.0
    %137 = vmatprep.subr.mxu0 0.0
    %138 = vmatpush1.msra.mxu0 0.0
    %139 = vmatprep.subr.mxu0 0.0
    %140 = vmatpush1.msra.mxu0 0.0
    %141 = vmatprep.subr.mxu0 0.0
    %142 = vmatpush1.msra.mxu0 0.0
    %143 = vmatprep.subr.mxu0 0.0
    %144 = vmatpush1.msra.mxu0 0.0
    %145 = vmatprep.subr.mxu0 0.0
    %146 = vmatpush1.msra.mxu0 0.0
    %147 = vmatprep.subr.mxu0 0.0
    %148 = vmatpush1.msra.mxu0 0.0
    %149 = vmatprep.subr.mxu0 0.0
    %150 = vmatpush1.msra.mxu0 0.0
    %151 = vmatprep.subr.mxu0 0.0
    %152 = vmatpush1.msra.mxu0 0.0
    %153 = vmatprep.subr.mxu0 0.0
    %154 = vmatpush1.msra.mxu0 0.0
    %155 = vmatprep.subr.mxu0 0.0
    %156 = vmatpush1.msra.mxu0 0.0
    %157 = vmatprep.subr.mxu0 0.0
    %158 = vmatpush1.msra.mxu0 0.0
    %159 = vmatprep.subr.mxu0 0.0
    %160 = vmatpush1.msra.mxu0 0.0
    %161 = vmatprep.subr.mxu0 0.0
    %162 = vmatpush1.msra.mxu0 0.0
    %163 = vmatprep.subr.mxu0 0.0
    %164 = vmatpush1.msra.mxu0 0.0
    %165 = vmatprep.subr.mxu0 0.0
    %166 = vmatpush1.msra.mxu0 0.0
    %167 = vmatprep.mubr.f32.mxu0 0.0
    %168 = vmatmul.mubr.f32.gmra.mrb[0].mxu0 %v101
    %v169 = vpop.f32.mrb[0].mxu0
    %v170 = vadd.f32 0.0, %v169
    %v171 = vpop.f32.mrb[0].mxu0
    %v172 = vadd.f32 0.0, %v171
    %173 = vdwg.mxu0
    %v174 = vld [vmem:[#allocation5] sm:$0xff]
    %v175 = vld [vmem:[#allocation5 + $0x8] sm:$0xff]
    %v176 = vld [vmem:[#allocation5 + $0x10] sm:$0xff]
    %v177 = vld [vmem:[#allocation5 + $0x18] sm:$0xff]
    %v178 = vld [vmem:[#allocation5 + $0x20] sm:$0xff]
    %v179 = vld [vmem:[#allocation5 + $0x28] sm:$0xff]
    %v180 = vld [vmem:[#allocation5 + $0x30] sm:$0xff]
    %v181 = vld [vmem:[#allocation5 + $0x38] sm:$0xff]
    %v182 = vld [vmem:[#allocation5 + $0x40] sm:$0xff]
    %v183 = vld [vmem:[#allocation5 + $0x48] sm:$0xff]
    %v184 = vld [vmem:[#allocation5 + $0x50] sm:$0xff]
    %v185 = vld [vmem:[#allocation5 + $0x58] sm:$0xff]
    %v186 = vld [vmem:[#allocation5 + $0x60] sm:$0xff]
    %v187 = vld [vmem:[#allocation5 + $0x68] sm:$0xff]
    %v188 = vld [vmem:[#allocation5 + $0x70] sm:$0xff]
    %v189 = vld [vmem:[#allocation5 + $0x78] sm:$0xff]
    %v190 = vld [vmem:[#allocation7] sm:$0xff]
    %v191 = vld [vmem:[#allocation7 + $0x8] sm:$0xff]
    %v192 = vld [vmem:[#allocation7 + $0x10] sm:$0xff]
    %v193 = vld [vmem:[#allocation7 + $0x18] sm:$0xff]
    %v194 = vld [vmem:[#allocation7 + $0x20] sm:$0xff]
    %v195 = vld [vmem:[#allocation7 + $0x28] sm:$0xff]
    %v196 = vld [vmem:[#allocation7 + $0x30] sm:$0xff]
    %v197 = vld [vmem:[#allocation7 + $0x38] sm:$0xff]
    %v198 = vld [vmem:[#allocation7 + $0x40] sm:$0xff]
    %v199 = vld [vmem:[#allocation7 + $0x48] sm:$0xff]
    %v200 = vld [vmem:[#allocation7 + $0x50] sm:$0xff]
    %v201 = vld [vmem:[#allocation7 + $0x58] sm:$0xff]
    %v202 = vld [vmem:[#allocation7 + $0x60] sm:$0xff]
    %v203 = vld [vmem:[#allocation7 + $0x68] sm:$0xff]
    %v204 = vld [vmem:[#allocation7 + $0x70] sm:$0xff]
    %v205 = vld [vmem:[#allocation7 + $0x78] sm:$0xff]
    %v206 = vld [vmem:[%s6 + $0x1] sm:$0x1]
    %v208 = vlaneseq
    %v209 = vshrl.u32 %v208, 7
    %v210 = vsub.s32 0, %v209
    %v211 = vrot.slane %v206, %v210
    %213 = vmatprep.subr.mxu0 0.0
    %214 = vmatpush1.msra.mxu0 %v190
    %215 = vmatprep.subr.mxu0 0.0
    %216 = vmatpush1.msra.mxu0 %v191
    %217 = vmatprep.subr.mxu0 0.0
    %218 = vmatpush1.msra.mxu0 %v192
    %219 = vmatprep.subr.mxu0 0.0
    %220 = vmatpush1.msra.mxu0 %v193
    %221 = vmatprep.subr.mxu0 0.0
    %222 = vmatpush1.msra.mxu0 %v194
    %223 = vmatprep.subr.mxu0 0.0
    %224 = vmatpush1.msra.mxu0 %v195
    %225 = vmatprep.subr.mxu0 0.0
    %226 = vmatpush1.msra.mxu0 %v196
    %227 = vmatprep.subr.mxu0 0.0
    %228 = vmatpush1.msra.mxu0 %v197
    %229 = vmatprep.subr.mxu0 0.0
    %230 = vmatpush1.msra.mxu0 %v198
    %231 = vmatprep.subr.mxu0 0.0
    %232 = vmatpush1.msra.mxu0 %v199
    %233 = vmatprep.subr.mxu0 0.0
    %234 = vmatpush1.msra.mxu0 %v200
    %235 = vmatprep.subr.mxu0 0.0
    %236 = vmatpush1.msra.mxu0 %v201
    %237 = vmatprep.subr.mxu0 0.0
    %238 = vmatpush1.msra.mxu0 %v202
    %239 = vmatprep.subr.mxu0 0.0
    %240 = vmatpush1.msra.mxu0 %v203
    %241 = vmatprep.subr.mxu0 0.0
    %242 = vmatpush1.msra.mxu0 %v204
    %243 = vmatprep.subr.mxu0 0.0
    %244 = vmatpush1.msra.mxu0 %v205
    %245 = vmatprep.subr.mxu0 0.0
    %246 = vmatpush1.msra.mxu0 0.0
    %247 = vmatprep.subr.mxu0 0.0
    %248 = vmatpush1.msra.mxu0 0.0
    %249 = vmatprep.subr.mxu0 0.0
    %250 = vmatpush1.msra.mxu0 0.0
    %251 = vmatprep.subr.mxu0 0.0
    %252 = vmatpush1.msra.mxu0 0.0
    %253 = vmatprep.subr.mxu0 0.0
    %254 = vmatpush1.msra.mxu0 0.0
    %255 = vmatprep.subr.mxu0 0.0
    %256 = vmatpush1.msra.mxu0 0.0
    %257 = vmatprep.subr.mxu0 0.0
    %258 = vmatpush1.msra.mxu0 0.0
    %259 = vmatprep.subr.mxu0 0.0
    %260 = vmatpush1.msra.mxu0 0.0
    %261 = vmatprep.subr.mxu0 0.0
    %262 = vmatpush1.msra.mxu0 0.0
    %263 = vmatprep.subr.mxu0 0.0
    %264 = vmatpush1.msra.mxu0 0.0
    %265 = vmatprep.subr.mxu0 0.0
    %266 = vmatpush1.msra.mxu0 0.0
    %267 = vmatprep.subr.mxu0 0.0
    %268 = vmatpush1.msra.mxu0 0.0
    %269 = vmatprep.subr.mxu0 0.0
    %270 = vmatpush1.msra.mxu0 0.0
    %271 = vmatprep.subr.mxu0 0.0
    %272 = vmatpush1.msra.mxu0 0.0
    %273 = vmatprep.subr.mxu0 0.0
    %274 = vmatpush1.msra.mxu0 0.0
    %275 = vmatprep.subr.mxu0 0.0
    %276 = vmatpush1.msra.mxu0 0.0
    %277 = vmatprep.mubr.f32.mxu0 0.0
    %278 = vmatmul.mubr.f32.gmra.mrb[0].mxu0 %v81
    %v279 = vpop.f32.mrb[0].mxu0
    %v280 = vadd.f32 %v211, %v279
    %v281 = vpop.f32.mrb[0].mxu0
    %282 = vdwg.mxu0
    %283 = vmatprep.subr.mxu0 0.0
    %284 = vmatpush1.msra.mxu0 %v174
    %285 = vmatprep.subr.mxu0 0.0
    %286 = vmatpush1.msra.mxu0 %v175
    %287 = vmatprep.subr.mxu0 0.0
    %288 = vmatpush1.msra.mxu0 %v176
    %289 = vmatprep.subr.mxu0 0.0
    %290 = vmatpush1.msra.mxu0 %v177
    %291 = vmatprep.subr.mxu0 0.0
    %292 = vmatpush1.msra.mxu0 %v178
    %293 = vmatprep.subr.mxu0 0.0
    %294 = vmatpush1.msra.mxu0 %v179
    %295 = vmatprep.subr.mxu0 0.0
    %296 = vmatpush1.msra.mxu0 %v180
    %297 = vmatprep.subr.mxu0 0.0
    %298 = vmatpush1.msra.mxu0 %v181
    %299 = vmatprep.subr.mxu0 0.0
    %300 = vmatpush1.msra.mxu0 %v182
    %301 = vmatprep.subr.mxu0 0.0
    %302 = vmatpush1.msra.mxu0 %v183
    %303 = vmatprep.subr.mxu0 0.0
    %304 = vmatpush1.msra.mxu0 %v184
    %305 = vmatprep.subr.mxu0 0.0
    %306 = vmatpush1.msra.mxu0 %v185
    %307 = vmatprep.subr.mxu0 0.0
    %308 = vmatpush1.msra.mxu0 %v186
    %309 = vmatprep.subr.mxu0 0.0
    %310 = vmatpush1.msra.mxu0 %v187
    %311 = vmatprep.subr.mxu0 0.0
    %312 = vmatpush1.msra.mxu0 %v188
    %313 = vmatprep.subr.mxu0 0.0
    %314 = vmatpush1.msra.mxu0 %v189
    %315 = vmatprep.subr.mxu0 0.0
    %316 = vmatpush1.msra.mxu0 0.0
    %317 = vmatprep.subr.mxu0 0.0
    %318 = vmatpush1.msra.mxu0 0.0
    %319 = vmatprep.subr.mxu0 0.0
    %320 = vmatpush1.msra.mxu0 0.0
    %321 = vmatprep.subr.mxu0 0.0
    %322 = vmatpush1.msra.mxu0 0.0
    %323 = vmatprep.subr.mxu0 0.0
    %324 = vmatpush1.msra.mxu0 0.0
    %325 = vmatprep.subr.mxu0 0.0
    %326 = vmatpush1.msra.mxu0 0.0
    %327 = vmatprep.subr.mxu0 0.0
    %328 = vmatpush1.msra.mxu0 0.0
    %329 = vmatprep.subr.mxu0 0.0
    %330 = vmatpush1.msra.mxu0 0.0
    %331 = vmatprep.subr.mxu0 0.0
    %332 = vmatpush1.msra.mxu0 0.0
    %333 = vmatprep.subr.mxu0 0.0
    %334 = vmatpush1.msra.mxu0 0.0
    %335 = vmatprep.subr.mxu0 0.0
    %336 = vmatpush1.msra.mxu0 0.0
    %337 = vmatprep.subr.mxu0 0.0
    %338 = vmatpush1.msra.mxu0 0.0
    %339 = vmatprep.subr.mxu0 0.0
    %340 = vmatpush1.msra.mxu0 0.0
    %341 = vmatprep.subr.mxu0 0.0
    %342 = vmatpush1.msra.mxu0 0.0
    %343 = vmatprep.subr.mxu0 0.0
    %344 = vmatpush1.msra.mxu0 0.0
    %345 = vmatprep.subr.mxu0 0.0
    %346 = vmatpush1.msra.mxu0 0.0
    %347 = vmatprep.mubr.f32.mxu0 0.0
    %348 = vmatmul.mubr.f32.gmra.mrb[0].mxu0 %v80
    %v349 = vpop.f32.mrb[0].mxu0
    %v350 = vadd.f32 %v170, %v349
    %v351 = vpop.f32.mrb[0].mxu0
    %352 = vdwg.mxu0
    %v353 = vld [vmem:[%s6] sm:$0x1]
    %v355 = vlaneseq
    %v356 = vshrl.u32 %v355, 7
    %v357 = vsub.s32 0, %v356
    %v358 = vrot.slane %v353, %v357
    %v360 = vadd.f32 %v350, %v358
    %v361 = vtanh.pop %v360
    %v362 = vadd.f32 %v280, %v172
    %v363 = vld [vmem:[%s6 + $0x2] sm:$0x1]
    %v365 = vlaneseq
    %v366 = vshrl.u32 %v365, 7
    %v367 = vsub.s32 0, %v366
    %v368 = vrot.slane %v363, %v367
    %v370 = vadd.f32 %v362, %v368
    %v371 = vtanh.pop %v370
    %v372 = vsub.f32 %v371, %v361
    %v373 = vmul.f32 %v372, 1.442695
    %v374 = vpow.pop %v373
    %v375 = vadd.f32 %v374, 1.0
    %v376 = vrcp.pop %v375
    %v377 = vsub.f32 1.0, %v376
    %v378 = vmul.f32 %v376, %v80
    %v379 = vmul.f32 %v377, %v280
    %v380 = vadd.f32 %v378, %v379
    %381 = vst [vmem:[#allocation10] sm:$0x3] %v380
    // Predicated region
    $region46: #{tpu_custom_call.1} parent=1 // pred_check
      _
    $region47: #{tpu_custom_call.1} parent=1 // pred_check_branch
      %383 = sbr.rel (0) target = $region49
    $region48: #{tpu_custom_call.1} parent=1 // pred_region
      %s385 = ssub.s32 32, 32
      %386 = vsyncadd [#allocation4], %s385
      %s388 = sshll.u32 [#allocation10], 4
      %s389 = int_to_ptr.vmem [resolvable:$true] %s388
      %391 = dma.vmem_to_hbm [thread:$0]  %s389, 32, %s7, [#allocation4]
    $region49: #{tpu_custom_call.1} parent=1 // pred_fallthru
      _
    // Predicated region
    $region50: #{tpu_custom_call.1} parent=1 // pred_check
      _
    $region51: #{tpu_custom_call.1} parent=1 // pred_check_branch
      %393 = sbr.rel (0) target = $region53
    $region52: #{tpu_custom_call.1} parent=1 // pred_region
      %394 = dma.done [#allocation4], 32
    $region53: #{tpu_custom_call.1} parent=1 // pred_fallthru
      _
    %395 = vsyncpa [#allocation3], 1
    %396 = vsyncpa [#allocation6], 1
    %397 = vsyncpa [#allocation9], 1
    %398 = vsyncpa [#allocation4], 1

</llo_original>
